<compile_context>
chip_gen: v7x
topology: tpu7x:2x2x1
jax: 0.10.0
libtpu: 0.0.40
codegen_flags: <defaults>
</compile_context>

<pallas_src>
import jax
import jax.numpy as jnp
from jax.experimental import pallas as pl
from jax.experimental.pallas import tpu as pltpu


def resblock_kernel(x_ref, w_ref, scale_ref, bias_ref, o_ref, xpad_ref):
    """One image per grid step.

    x_ref    : (1, H, W*C)   bf16  input rows, channels innermost (lane-dense)
    w_ref    : (3, W*C, W*C) bf16  block-banded 3x3 conv taps, one per ky
                                   (W-direction zero padding folded in)
    scale_ref: (1, W*C)      f32   folded BN scale (gamma/sqrt(var+eps)), tiled over W
    bias_ref : (1, W*C)      f32   folded BN bias  (beta - mean*scale), tiled over W
    o_ref    : (1, H, W*C)   f32   output rows
    xpad_ref : (H+2, W*C)    bf16  VMEM scratch, H-direction halo buffer
    """
    H = x_ref.shape[1]

    # Re-zero the halo buffer every step: the scratch persists across grid
    # steps, and under megacore partitioning a core's first step need not
    # have program_id == 0, so do NOT gate this on pl.when(program_id == 0).
    xpad_ref[...] = jnp.zeros_like(xpad_ref)
    xpad_ref[1:H + 1, :] = x_ref[0]

    # 3x3 conv as 3 lane-dense MXU matmuls (K = N = W*C), bf16 in / f32 acc.
    # The f32 accumulator here is only (H, W*C) = 2 vregs; for realistic
    # sizes it would live in a VMEM scratch / be tiled over H.
    acc = jnp.dot(xpad_ref[0:H, :], w_ref[0],
                  preferred_element_type=jnp.float32)
    acc = acc + jnp.dot(xpad_ref[1:H + 1, :], w_ref[1],
                        preferred_element_type=jnp.float32)
    acc = acc + jnp.dot(xpad_ref[2:H + 2, :], w_ref[2],
                        preferred_element_type=jnp.float32)

    # Folded BatchNorm (inference) + ReLU + residual add, all in f32.
    y = jnp.maximum(acc * scale_ref[...] + bias_ref[...], 0.0)
    o_ref[0] = (x_ref[0].astype(jnp.float32) + y).astype(o_ref.dtype)


def resblock_forward(x_nchw, w_oihw, gamma, beta, run_mean, run_var, eps=1e-5):
    N, C, H, W = x_nchw.shape
    WC = W * C

    # NCHW -> NHWC -> (N, H, W*C): channels innermost, rows lane-dense
    # (W*C = 128 here), cast to bf16 for HBM/VMEM traffic + MXU.
    x = (jnp.transpose(x_nchw, (0, 2, 3, 1))
            .reshape(N, H, WC)
            .astype(jnp.bfloat16))

    # Build the block-banded per-ky weights, shape (3, W*C, W*C):
    #   Wb[ky, wi*C + ci, wo*C + co] = w[co, ci, ky, kx]  with kx = wi - wo + 1
    # valid only for 0 <= kx <= 2; out-of-range taps are dropped, which
    # implements the W-direction zero padding inside the matmul.
    w_k = jnp.transpose(w_oihw, (2, 3, 1, 0))            # (ky, kx, ci, co)
    wi = jnp.arange(W)[:, None]
    wo = jnp.arange(W)[None, :]
    kx = wi - wo + 1                                     # (W, W)
    valid = (kx >= 0) & (kx <= 2)
    kx_safe = jnp.clip(kx, 0, 2)
    blocks = jnp.where(valid[None, :, :, None, None],
                       w_k[:, kx_safe], 0.0)             # (3, W, W, C, C)
    w_banded = (blocks.transpose(0, 1, 3, 2, 4)          # (ky, wi, ci, wo, co)
                      .reshape(3, WC, WC)
                      .astype(jnp.bfloat16))

    # Folded inference BatchNorm, tiled along W so it broadcasts over the
    # lane-dense (W*C) axis; kept in f32 for the epilogue.
    scale = (gamma / jnp.sqrt(run_var + eps)).astype(jnp.float32)
    bias = (beta - run_mean * scale).astype(jnp.float32)
    scale_t = jnp.tile(scale, W).reshape(1, WC)
    bias_t = jnp.tile(bias, W).reshape(1, WC)

    out_flat = pl.pallas_call(
        resblock_kernel,
        out_shape=jax.ShapeDtypeStruct((N, H, WC), jnp.float32),
        grid_spec=pltpu.PrefetchScalarGridSpec(
            num_scalar_prefetch=0,
            grid=(N,),
            in_specs=[
                pl.BlockSpec((1, H, WC), lambda n: (n, 0, 0)),   # x
                pl.BlockSpec((3, WC, WC), lambda n: (0, 0, 0)),  # banded weights
                pl.BlockSpec((1, WC), lambda n: (0, 0)),         # BN scale
                pl.BlockSpec((1, WC), lambda n: (0, 0)),         # BN bias
            ],
            out_specs=pl.BlockSpec((1, H, WC), lambda n: (n, 0, 0)),
            scratch_shapes=[pltpu.VMEM((H + 2, WC), jnp.bfloat16)],
        ),
        compiler_params=pltpu.CompilerParams(
            dimension_semantics=("parallel",),
            vmem_limit_bytes=32 * 1024 * 1024,
        ),
    )(x, w_banded, scale_t, bias_t)

    out_nhwc = out_flat.reshape(N, H, W, C)
    return jnp.transpose(out_nhwc, (0, 3, 1, 2))         # back to NCHW f32


def resblock_reference(x, w, gamma, beta, rm, rv, eps=1e-5):
    y = jax.lax.conv_general_dilated(
        x, w, window_strides=(1, 1), padding=((1, 1), (1, 1)),
        dimension_numbers=("NCHW", "OIHW", "NCHW"))
    scale = gamma / jnp.sqrt(rv + eps)
    shift = beta - rm * scale
    y = y * scale[None, :, None, None] + shift[None, :, None, None]
    y = jnp.maximum(y, 0.0)
    return x + y


if __name__ == "__main__":
    N, C, H, W = 2, 8, 16, 16
    key = jax.random.PRNGKey(0)
    kx_key, kw_key = jax.random.split(key)

    x = jax.random.normal(kx_key, (N, C, H, W), dtype=jnp.float32)
    # Conv2d(nf, nf, 3, padding=1, bias=False) weight: (Cout, Cin, 3, 3)
    w = 0.1 * jax.random.normal(kw_key, (C, C, 3, 3), dtype=jnp.float32)
    # Deterministic (non-trivial) BatchNorm parameters / running stats.
    gamma = jnp.linspace(0.5, 1.5, C, dtype=jnp.float32)
    beta = jnp.linspace(-0.2, 0.2, C, dtype=jnp.float32)
    run_mean = jnp.linspace(-0.1, 0.1, C, dtype=jnp.float32)
    run_var = jnp.linspace(0.8, 1.2, C, dtype=jnp.float32)

    out = resblock_forward(x, w, gamma, beta, run_mean, run_var)
    out = jax.block_until_ready(out)

    ref = resblock_reference(x, w, gamma, beta, run_mean, run_var)
    assert out.shape == (N, C, H, W)
    # bf16 activations/weights with f32 accumulation: loosened tolerance.
    assert jnp.allclose(out, ref, atol=5e-2, rtol=5e-2), "mismatch vs reference"
    print("KERNEL_OK")
</pallas_src>

<mosaic_0001>
module attributes {stable_mosaic.version = 11 : i64} {
  func.func @resblock_kernel(%arg0: i32, %arg1: memref<1x16x128xbf16, #tpu.memory_space<vmem>>, %arg2: memref<3x128x128xbf16, #tpu.memory_space<vmem>>, %arg3: memref<1x128xf32, #tpu.memory_space<vmem>>, %arg4: memref<1x128xf32, #tpu.memory_space<vmem>>, %arg5: memref<1x16x128xf32, #tpu.memory_space<vmem>>, %arg6: memref<18x128xbf16, #tpu.memory_space<vmem>>) attributes {dimension_semantics = [#tpu.dimension_semantics<parallel>], iteration_bounds = array<i64: 2>, scalar_prefetch = 0 : i64, scratch_operands = 1 : i64, tpu.core_type = #tpu.core_type<tc>, window_params = [{transform_indices = @transform_0, window_bounds = array<i64: 1, 16, 128>}, {pipeline_mode = #tpu.pipeline_mode<synchronous>, transform_indices = @transform_1, window_bounds = array<i64: 3, 128, 128>}, {pipeline_mode = #tpu.pipeline_mode<synchronous>, transform_indices = @transform_2, window_bounds = array<i64: 1, 128>}, {pipeline_mode = #tpu.pipeline_mode<synchronous>, transform_indices = @transform_3, window_bounds = array<i64: 1, 128>}, {transform_indices = @transform_4, window_bounds = array<i64: 1, 16, 128>}]} {
    %cst = arith.constant 0.000000e+00 : bf16
    %0 = vector.broadcast %cst : bf16 to vector<18x128xbf16>
    %c0 = arith.constant 0 : index
    %c0_0 = arith.constant 0 : index
    %1 = vector.load %arg6[%c0, %c0_0] : memref<18x128xbf16, #tpu.memory_space<vmem>>, vector<18x128xbf16>
    tpu.vector_store %arg6[%c0, %c0_0], %0 {strides = array<i32>} : memref<18x128xbf16, #tpu.memory_space<vmem>>, vector<18x128xbf16>,
    %c0_1 = arith.constant 0 : index
    %c0_2 = arith.constant 0 : index
    %c0_3 = arith.constant 0 : index
    %2 = vector.load %arg1[%c0_1, %c0_2, %c0_3] : memref<1x16x128xbf16, #tpu.memory_space<vmem>>, vector<1x16x128xbf16>
    %3 = vector.shape_cast %2 : vector<1x16x128xbf16> to vector<16x128xbf16>
    %c1 = arith.constant 1 : index
    %c0_4 = arith.constant 0 : index
    %4 = vector.load %arg6[%c1, %c0_4] : memref<18x128xbf16, #tpu.memory_space<vmem>>, vector<16x128xbf16>
    tpu.vector_store %arg6[%c1, %c0_4], %3 {strides = array<i32>} : memref<18x128xbf16, #tpu.memory_space<vmem>>, vector<16x128xbf16>,
    %c0_5 = arith.constant 0 : index
    %c0_6 = arith.constant 0 : index
    %5 = vector.load %arg6[%c0_5, %c0_6] : memref<18x128xbf16, #tpu.memory_space<vmem>>, vector<16x128xbf16>
    %c0_7 = arith.constant 0 : index
    %c0_8 = arith.constant 0 : index
    %c0_9 = arith.constant 0 : index
    %6 = vector.load %arg2[%c0_7, %c0_8, %c0_9] : memref<3x128x128xbf16, #tpu.memory_space<vmem>>, vector<1x128x128xbf16>
    %7 = vector.shape_cast %6 : vector<1x128x128xbf16> to vector<128x128xbf16>
    %cst_10 = arith.constant dense<0.000000e+00> : vector<16x128xf32>
    %8 = tpu.matmul %5, %7, %cst_10 {dimension_numbers = #tpu.dot_dimension_numbers<[1], [0], [0], [1], [0, 0, 1, 1], [], []>} : vector<16x128xbf16>, vector<128x128xbf16>, vector<16x128xf32> -> vector<16x128xf32>
    %c1_11 = arith.constant 1 : index
    %c0_12 = arith.constant 0 : index
    %9 = vector.load %arg6[%c1_11, %c0_12] : memref<18x128xbf16, #tpu.memory_space<vmem>>, vector<16x128xbf16>
    %c1_13 = arith.constant 1 : index
    %c0_14 = arith.constant 0 : index
    %c0_15 = arith.constant 0 : index
    %10 = vector.load %arg2[%c1_13, %c0_14, %c0_15] : memref<3x128x128xbf16, #tpu.memory_space<vmem>>, vector<1x128x128xbf16>
    %11 = vector.shape_cast %10 : vector<1x128x128xbf16> to vector<128x128xbf16>
    %cst_16 = arith.constant dense<0.000000e+00> : vector<16x128xf32>
    %12 = tpu.matmul %9, %11, %cst_16 {dimension_numbers = #tpu.dot_dimension_numbers<[1], [0], [0], [1], [0, 0, 1, 1], [], []>} : vector<16x128xbf16>, vector<128x128xbf16>, vector<16x128xf32> -> vector<16x128xf32>
    %13 = arith.addf %8, %12 : vector<16x128xf32>
    %c2 = arith.constant 2 : index
    %c0_17 = arith.constant 0 : index
    %14 = vector.load %arg6[%c2, %c0_17] : memref<18x128xbf16, #tpu.memory_space<vmem>>, vector<16x128xbf16>
    %c2_18 = arith.constant 2 : index
    %c0_19 = arith.constant 0 : index
    %c0_20 = arith.constant 0 : index
    %15 = vector.load %arg2[%c2_18, %c0_19, %c0_20] : memref<3x128x128xbf16, #tpu.memory_space<vmem>>, vector<1x128x128xbf16>
    %16 = vector.shape_cast %15 : vector<1x128x128xbf16> to vector<128x128xbf16>
    %cst_21 = arith.constant dense<0.000000e+00> : vector<16x128xf32>
    %17 = tpu.matmul %14, %16, %cst_21 {dimension_numbers = #tpu.dot_dimension_numbers<[1], [0], [0], [1], [0, 0, 1, 1], [], []>} : vector<16x128xbf16>, vector<128x128xbf16>, vector<16x128xf32> -> vector<16x128xf32>
    %18 = arith.addf %13, %17 : vector<16x128xf32>
    %c0_22 = arith.constant 0 : index
    %c0_23 = arith.constant 0 : index
    %19 = vector.load %arg3[%c0_22, %c0_23] : memref<1x128xf32, #tpu.memory_space<vmem>>, vector<1x128xf32>
    %20 = vector.broadcast %19 : vector<1x128xf32> to vector<16x128xf32>
    %21 = arith.mulf %18, %20 : vector<16x128xf32>
    %c0_24 = arith.constant 0 : index
    %c0_25 = arith.constant 0 : index
    %22 = vector.load %arg4[%c0_24, %c0_25] : memref<1x128xf32, #tpu.memory_space<vmem>>, vector<1x128xf32>
    %23 = vector.broadcast %22 : vector<1x128xf32> to vector<16x128xf32>
    %24 = arith.addf %21, %23 : vector<16x128xf32>
    %cst_26 = arith.constant 0.000000e+00 : f32
    %25 = vector.broadcast %cst_26 : f32 to vector<16x128xf32>
    %26 = arith.maximumf %24, %25 : vector<16x128xf32>
    %c0_27 = arith.constant 0 : index
    %c0_28 = arith.constant 0 : index
    %c0_29 = arith.constant 0 : index
    %27 = vector.load %arg1[%c0_27, %c0_28, %c0_29] : memref<1x16x128xbf16, #tpu.memory_space<vmem>>, vector<1x16x128xbf16>
    %28 = vector.shape_cast %27 : vector<1x16x128xbf16> to vector<16x128xbf16>
    %29 = arith.extf %28 : vector<16x128xbf16> to vector<16x128xf32>
    %30 = arith.addf %29, %26 : vector<16x128xf32>
    %c0_30 = arith.constant 0 : index
    %c0_31 = arith.constant 0 : index
    %c0_32 = arith.constant 0 : index
    %31 = vector.load %arg5[%c0_30, %c0_31, %c0_32] : memref<1x16x128xf32, #tpu.memory_space<vmem>>, vector<1x16x128xf32>
    %32 = vector.shape_cast %31 : vector<1x16x128xf32> to vector<16x128xf32>
    %33 = vector.shape_cast %30 : vector<16x128xf32> to vector<1x16x128xf32>
    tpu.vector_store %arg5[%c0_30, %c0_31, %c0_32], %33 {strides = array<i32>} : memref<1x16x128xf32, #tpu.memory_space<vmem>>, vector<1x16x128xf32>,
    return
  }
  func.func @transform_0(%arg0: i32) -> (i32, i32, i32) {
    %c0_i32 = arith.constant 0 : i32
    %c0_i32_0 = arith.constant 0 : i32
    %c0_i32_1 = arith.constant 0 : i32
    return %arg0, %c0_i32, %c0_i32_0 : i32, i32, i32
  }
  func.func @transform_1(%arg0: i32) -> (i32, i32, i32) {
    %c0_i32 = arith.constant 0 : i32
    %c0_i32_0 = arith.constant 0 : i32
    %c0_i32_1 = arith.constant 0 : i32
    %c0_i32_2 = arith.constant 0 : i32
    return %c0_i32, %c0_i32_0, %c0_i32_1 : i32, i32, i32
  }
  func.func @transform_2(%arg0: i32) -> (i32, i32) {
    %c0_i32 = arith.constant 0 : i32
    %c0_i32_0 = arith.constant 0 : i32
    %c0_i32_1 = arith.constant 0 : i32
    return %c0_i32, %c0_i32_0 : i32, i32
  }
  func.func @transform_3(%arg0: i32) -> (i32, i32) {
    %c0_i32 = arith.constant 0 : i32
    %c0_i32_0 = arith.constant 0 : i32
    %c0_i32_1 = arith.constant 0 : i32
    return %c0_i32, %c0_i32_0 : i32, i32
  }
  func.func @transform_4(%arg0: i32) -> (i32, i32, i32) {
    %c0_i32 = arith.constant 0 : i32
    %c0_i32_0 = arith.constant 0 : i32
    %c0_i32_1 = arith.constant 0 : i32
    return %arg0, %c0_i32, %c0_i32_0 : i32, i32, i32
  }
}

</mosaic_0001>

<llo_original>
// kernel: tpu_custom_call.1
$region0: #{tpu_custom_call.1}
  #allocation0 [shape = 'u32[]', space=smem, size = 0x4, offset = 0x4, fixed_abs, tag = 'smem constant byte address 0x4 - core index']
  #allocation1 [shape = 'u32[144,128]{1,0:T(1,128)}', space=vmem, size = 0x12000, scoped, tag = 'internal scratch']
  #allocation2 [shape = 'bf16[18,128]{1,0:T(8,128)(2,1)}', space=vmem, size = 0x1800, scoped, tag = 'scratch operand']
  %s0 = inlined_call_operand.hbm [shape: bf16[2,16,128], index: 0, kind: input, shape index: {}]
  %s1 = inlined_call_operand.hbm [shape: bf16[3,128,128], index: 1, kind: input, shape index: {}]
  %s2 = inlined_call_operand.vmem [shape: f32[1,128], index: 2, kind: input, shape index: {}]
  %s3 = inlined_call_operand.vmem [shape: f32[1,128], index: 3, kind: input, shape index: {}]
  %s4 = inlined_call_operand.hbm [shape: f32[2,16,128], index: 4, kind: output, shape index: {}]
  %s5 = sld [smem:[#allocation0]]
  $region57: #{tpu_custom_call.1} parent=0
    _
  %s7 = ssub.s32 1, %s5
  %s8 = scalar_select 0, %s7, %s5
  $region1: #{tpu_custom_call.1} parent=0
    #allocation3 [shape = 'u8[8192]{0}', space=vmem, size = 0x2000, scoped, tag = 'input window, operand 0']
    #allocation4 [shape = 's32[2]{0}', space=sflag, size = 0x8, scoped, tag = 'scoped memory for tpu_custom_call.1']
    #allocation5 [shape = 's32[2]{0}', space=sflag, size = 0x8, scoped, tag = 'scoped memory for tpu_custom_call.1']
    #allocation6 [shape = 'u8[98304]{0}', space=vmem, size = 0x18000, scoped, tag = 'input window, operand 1, single buffered']
    #allocation7 [shape = 's32[1]{0}', space=sflag, size = 0x4, scoped, tag = 'scoped memory for tpu_custom_call.1']
    #allocation8 [shape = 'u8[16384]{0}', space=vmem, size = 0x4000, scoped, tag = 'output window, operand 0']
    %9 = vsyncpa [#allocation4], 0
    %s10 = scalar_lea.sflag [#allocation4], 1
    %11 = vsyncpa %s10, 0
    %12 = vsyncpa [#allocation7], 0
    %13 = vsyncpa [#allocation5], 0
    %s14 = scalar_lea.sflag [#allocation5], 1
    %15 = vsyncpa %s14, 0
    loop: start=0, step=1, limit=4
    $region2: #{tpu_custom_call.1} parent=1 // loop_pre_header
      _
    $region3: #{tpu_custom_call.1} parent=1 // loop_header
      %s17 = sphi 0, %s21
      %p18 = scmp.ge.s32.totalorder %s17, 4
      %s27 = sphi 0, %s29
      %s30 = sphi 0, %s27
      %s31 = sphi 0, %s30
      %s47 = sphi 0, %s31
      %s51 = sphi 0, %s51
      %s53 = sphi 0, %s51
      %s54 = sphi 0, %s53
      %s68 = sphi 0, %s54
      %s72 = sphi 0, %s72
      %s74 = sphi 0, %s72
      %s75 = sphi 0, %s74
      %s89 = sphi 0, %s75
      %s93 = sphi 0, %s93
      %s95 = sphi 0, %s93
      %s96 = sphi 0, %s95
      %s110 = sphi 0, %s96
      %s116 = sphi 0, %s118
      %s119 = sphi 0, %s116
      %s120 = sphi 0, %s119
      %s136 = sphi 0, %s120
    $region4: #{tpu_custom_call.1} parent=1 // loop_header_branch
      %20 = sbr.rel (%p18) target = $region8
    $region5: #{tpu_custom_call.1} parent=1 // loop_body
      %s22 = ssub.s32 %s17, 1
      %s23 = ssub.s32 %s17, 2
      %s24 = sadd.s32 %s17, 1
      %s25 = ssub.s32 %s17, %s24
      %p26 = scmp.eq.s32.totalorder %s25, 0
      %s28 = sadd.s32 %s27, 1
      %s29 = scalar_select %p26, %s27, %s28
      %p32 = pneg %p26
      %p33 = scmp.eq.s32.totalorder %s17, 1
      %p34 = por %p32, %p33
      %p35 = scmp.ne.s32.totalorder %s27, %s30
      %p36 = scmp.eq.s32.totalorder %s17, 0
      %p37 = por %p35, %p36
      %p38 = scmp.ne.s32.totalorder %s27, %s30
      %p39 = scmp.eq.s32.totalorder %s22, 1
      %p40 = por %p38, %p39
      %p41 = scmp.ne.s32.totalorder %s30, %s31
      %p42 = scmp.eq.s32.totalorder %s22, 0
      %p43 = por %p41, %p42
      %p44 = scmp.ne.s32.totalorder %s30, %s31
      %p45 = scmp.eq.s32.totalorder %s23, 1
      %p46 = por %p44, %p45
      %p48 = scmp.ne.s32.totalorder %s31, %s47
      %p49 = scmp.eq.s32.totalorder %s23, 0
      %p50 = por %p48, %p49
      %s52 = sadd.s32 %s51, 1
      %p55 = scmp.eq.s32.totalorder %s17, 1
      %p56 = scmp.ne.s32.totalorder %s51, %s53
      %p57 = scmp.eq.s32.totalorder %s17, 0
      %p58 = por %p56, %p57
      %p59 = scmp.ne.s32.totalorder %s51, %s53
      %p60 = scmp.eq.s32.totalorder %s22, 1
      %p61 = por %p59, %p60
      %p62 = scmp.ne.s32.totalorder %s53, %s54
      %p63 = scmp.eq.s32.totalorder %s22, 0
      %p64 = por %p62, %p63
      %p65 = scmp.ne.s32.totalorder %s53, %s54
      %p66 = scmp.eq.s32.totalorder %s23, 1
      %p67 = por %p65, %p66
      %p69 = scmp.ne.s32.totalorder %s54, %s68
      %p70 = scmp.eq.s32.totalorder %s23, 0
      %p71 = por %p69, %p70
      %s73 = sadd.s32 %s72, 1
      %p76 = scmp.eq.s32.totalorder %s17, 1
      %p77 = scmp.ne.s32.totalorder %s72, %s74
      %p78 = scmp.eq.s32.totalorder %s17, 0
      %p79 = por %p77, %p78
      %p80 = scmp.ne.s32.totalorder %s72, %s74
      %p81 = scmp.eq.s32.totalorder %s22, 1
      %p82 = por %p80, %p81
      %p83 = scmp.ne.s32.totalorder %s74, %s75
      %p84 = scmp.eq.s32.totalorder %s22, 0
      %p85 = por %p83, %p84
      %p86 = scmp.ne.s32.totalorder %s74, %s75
      %p87 = scmp.eq.s32.totalorder %s23, 1
      %p88 = por %p86, %p87
      %p90 = scmp.ne.s32.totalorder %s75, %s89
      %p91 = scmp.eq.s32.totalorder %s23, 0
      %p92 = por %p90, %p91
      %s94 = sadd.s32 %s93, 1
      %p97 = scmp.eq.s32.totalorder %s17, 1
      %p98 = scmp.ne.s32.totalorder %s93, %s95
      %p99 = scmp.eq.s32.totalorder %s17, 0
      %p100 = por %p98, %p99
      %p101 = scmp.ne.s32.totalorder %s93, %s95
      %p102 = scmp.eq.s32.totalorder %s22, 1
      %p103 = por %p101, %p102
      %p104 = scmp.ne.s32.totalorder %s95, %s96
      %p105 = scmp.eq.s32.totalorder %s22, 0
      %p106 = por %p104, %p105
      %p107 = scmp.ne.s32.totalorder %s95, %s96
      %p108 = scmp.eq.s32.totalorder %s23, 1
      %p109 = por %p107, %p108
      %p111 = scmp.ne.s32.totalorder %s96, %s110
      %p112 = scmp.eq.s32.totalorder %s23, 0
      %p113 = por %p111, %p112
      %s114 = ssub.s32 %s17, %s24
      %p115 = scmp.eq.s32.totalorder %s114, 0
      %s117 = sadd.s32 %s116, 1
      %s118 = scalar_select %p115, %s116, %s117
      %p121 = pneg %p115
      %p122 = scmp.eq.s32.totalorder %s17, 1
      %p123 = por %p121, %p122
      %p124 = scmp.ne.s32.totalorder %s116, %s119
      %p125 = scmp.eq.s32.totalorder %s17, 0
      %p126 = por %p124, %p125
      %p127 = scmp.ne.s32.totalorder %s116, %s119
      %p128 = scmp.eq.s32.totalorder %s22, 1
      %p129 = por %p127, %p128
      %p130 = scmp.ne.s32.totalorder %s119, %s120
      %p131 = scmp.eq.s32.totalorder %s22, 0
      %p132 = por %p130, %p131
      %p133 = scmp.ne.s32.totalorder %s119, %s120
      %p134 = scmp.eq.s32.totalorder %s23, 1
      %p135 = por %p133, %p134
      %p137 = scmp.ne.s32.totalorder %s120, %s136
      %p138 = scmp.eq.s32.totalorder %s23, 0
      %p139 = por %p137, %p138
      %p140 = scmp.le.s32.totalorder 1, %s17
      %p141 = scmp.lt.s32.totalorder %s17, 3
      %p142 = pnand %p140, %p141
      %p143 = pneg %p142
      // Predicated region
      $region9: #{tpu_custom_call.1} parent=5 // pred_check
        _
      $region10: #{tpu_custom_call.1} parent=5 // pred_check_branch
        %145 = sbr.rel (%p142) target = $region12
      $region11: #{tpu_custom_call.1} parent=5 // pred_region
        %s146 = ssub.s32 %s17, 1
        // Predicated region
        $region13: #{tpu_custom_call.1} parent=11 // pred_check
          %p147 = pneg %p64
        $region14: #{tpu_custom_call.1} parent=11 // pred_check_branch
          %149 = sbr.rel (%p147) target = $region16
        $region15: #{tpu_custom_call.1} parent=11 // pred_region
          %s151 = ssub.s32 3072, 3072
          %152 = vsyncadd [#allocation7], %s151
          %s153 = sshll.u32 [#allocation6], 4
          %s154 = int_to_ptr.vmem [resolvable:$true] %s153
          %159 = dma.hbm_to_vmem [thread:$0]  %s1, 3072, %s154, [#allocation7], 64, 64, 4
        $region16: #{tpu_custom_call.1} parent=11 // pred_fallthru
          _
        // Predicated region
        $region17: #{tpu_custom_call.1} parent=11 // pred_check
          %p160 = pneg %p85
        $region18: #{tpu_custom_call.1} parent=11 // pred_check_branch
          %162 = sbr.rel (%p160) target = $region20
        $region19: #{tpu_custom_call.1} parent=11 // pred_region
          _
        $region20: #{tpu_custom_call.1} parent=11 // pred_fallthru
          _
        // Predicated region
        $region21: #{tpu_custom_call.1} parent=11 // pred_check
          %p163 = pneg %p106
        $region22: #{tpu_custom_call.1} parent=11 // pred_check_branch
          %165 = sbr.rel (%p163) target = $region24
        $region23: #{tpu_custom_call.1} parent=11 // pred_region
          _
        $region24: #{tpu_custom_call.1} parent=11 // pred_fallthru
          _
      $region12: #{tpu_custom_call.1} parent=5 // pred_fallthru
        _
      %p166 = scmp.lt.s32.totalorder %s17, 2
      // Predicated region
      $region25: #{tpu_custom_call.1} parent=5 // pred_check
        %p167 = pneg %p166
      $region26: #{tpu_custom_call.1} parent=5 // pred_check_branch
        %169 = sbr.rel (%p167) target = $region28
      $region27: #{tpu_custom_call.1} parent=5 // pred_region
        // Predicated region
        $region29: #{tpu_custom_call.1} parent=27 // pred_check
          %p170 = pneg %p37
        $region30: #{tpu_custom_call.1} parent=27 // pred_check_branch
          %172 = sbr.rel (%p170) target = $region32
        $region31: #{tpu_custom_call.1} parent=27 // pred_region
          %s173 = sand.u32 %s27, 1
          %s174 = scalar_lea.sflag [#allocation4], %s173
          %s175 = sand.u32 %s27, 1
          %s176 = smul.addr %s175, 8
          %s177 = scalar_lea.vmem [#allocation3], %s176
          %s179 = ssub.s32 128, 128
          %180 = vsyncadd %s174, %s179
          %s181 = smul.addr %s17, 2
          %s182 = smul.addr %s181, 64
          %s183 = scalar_lea.hbm %s0, %s182
          %s184 = sshll.u32 %s177, 4
          %s185 = int_to_ptr.vmem [resolvable:$true] %s184
          %190 = dma.hbm_to_vmem [thread:$0]  %s183, 128, %s185, %s174, 64, 64, 4
        $region32: #{tpu_custom_call.1} parent=27 // pred_fallthru
          _
      $region28: #{tpu_custom_call.1} parent=5 // pred_fallthru
        _
      %p191 = scmp.le.s32.totalorder 1, %s17
      %p192 = scmp.lt.s32.totalorder %s17, 3
      %p193 = pnand %p191, %p192
      %p194 = pneg %p193
      // Predicated region
      $region33: #{tpu_custom_call.1} parent=5 // pred_check
        _
      $region34: #{tpu_custom_call.1} parent=5 // pred_check_branch
        %196 = sbr.rel (%p193) target = $region36
      $region35: #{tpu_custom_call.1} parent=5 // pred_region
        %s197 = ssub.s32 %s17, 1
        %s198 = sand.u32 %s30, 1
        %s199 = scalar_lea.sflag [#allocation4], %s198
        %s200 = sand.u32 %s30, 1
        %s201 = smul.addr %s200, 8
        %s202 = scalar_lea.vmem [#allocation3], %s201
        // Predicated region
        $region37: #{tpu_custom_call.1} parent=35 // pred_check
          %p203 = pneg %p43
        $region38: #{tpu_custom_call.1} parent=35 // pred_check_branch
          %205 = sbr.rel (%p203) target = $region40
        $region39: #{tpu_custom_call.1} parent=35 // pred_region
          %206 = dma.done %s199, 128
        $region40: #{tpu_custom_call.1} parent=35 // pred_fallthru
          _
        // Predicated region
        $region41: #{tpu_custom_call.1} parent=35 // pred_check
          %p207 = pneg %p64
        $region42: #{tpu_custom_call.1} parent=35 // pred_check_branch
          %209 = sbr.rel (%p207) target = $region44
        $region43: #{tpu_custom_call.1} parent=35 // pred_region
          %210 = dma.done [#allocation7], 3072
        $region44: #{tpu_custom_call.1} parent=35 // pred_fallthru
          _
        %s211 = sand.u32 %s30, 1
        %s212 = scalar_lea.sflag [#allocation4], %s211
        %s213 = sand.u32 %s30, 1
        %s214 = smul.addr %s213, 8
        %s215 = scalar_lea.vmem [#allocation3], %s214
        %p216 = pneg %p43
        %p217 = pneg %p40
        %p218 = pneg %p64
        %p219 = pneg %p61
        %p220 = pneg %p85
        %p221 = pneg %p82
        %p222 = pneg %p106
        %p223 = pneg %p103
        %p224 = pneg %p132
        %p225 = pneg %p129
        %s226 = sand.u32 %s119, 1
        %s227 = scalar_lea.sflag [#allocation5], %s226
        %s228 = sand.u32 %s119, 1
        %s229 = smul.addr %s228, 16
        %s230 = scalar_lea.vmem [#allocation8], %s229
        %232 = vst [vmem:[#allocation2] sm:$0xf] 0
        %233 = vst [vmem:[#allocation2 + $0x4] sm:$0xf] 0
        %234 = vst [vmem:[#allocation2 + $0x8] sm:$0x1] 0
        %v235 = vld [vmem:[%s202] sm:$0xf]
        %v236 = vld [vmem:[%s202 + $0x4] sm:$0xf]
        %vm237 = vsmask.f32 256
        %vm238 = vsmask.f32 4368
        %vm239 = vmor %vm237, %vm238
        %v241 = vshrl.u32 %v235, 16
        %v243 = vrot.slane %v241, 7
        %v244 = vshll.u32 %v235, 16
        %v246 = vor.u32 %v243, %v244
        %v247 = vrot.slane %v243, 4
        %v249 = vshrl.u32 %v236, 16
        %v251 = vrot.slane %v249, 7
        %v252 = vshll.u32 %v236, 16
        %v254 = vor.u32 %v251, %v252
        %v255 = vsel %vm239, %v247, %v254
        %v256 = vrot.slane %v251, 4
        %vm260 = vcmask 1043456
        %vm261 = vsmask.f32 7938
        %vm262 = vmand %vm260, %vm261
        %v263 = vld [vmem:[#allocation2] sm:$0xf]
        %v264 = vsel %vm262, %v246, %v263
        %265 = vst [vmem:[#allocation2] sm:$0xf] %v264
        %266 = vst [vmem:[#allocation2 + $0x4] sm:$0xf] %v255
        %vm267 = vcmask 1040384
        %vm268 = vmand %vm267, %vm237
        %v269 = vld [vmem:[#allocation2 + $0x8] sm:$0x1]
        %v270 = vsel %vm268, %v256, %v269
        %271 = vst [vmem:[#allocation2 + $0x8] sm:$0x1] %v270
        %v272 = vld [vmem:[#allocation2] sm:$0xf]
        %v273 = vld [vmem:[#allocation2 + $0x4] sm:$0xf]
        %v274 = vld [vmem:[#allocation6] sm:$0xf]
        %v275 = vld [vmem:[#allocation6 + $0x4] sm:$0xf]
        %v276 = vld [vmem:[#allocation6 + $0x8] sm:$0xf]
        %v277 = vld [vmem:[#allocation6 + $0xc] sm:$0xf]
        %v278 = vld [vmem:[#allocation6 + $0x10] sm:$0xf]
        %v279 = vld [vmem:[#allocation6 + $0x14] sm:$0xf]
        %v280 = vld [vmem:[#allocation6 + $0x18] sm:$0xf]
        %v281 = vld [vmem:[#allocation6 + $0x1c] sm:$0xf]
        %v282 = vld [vmem:[#allocation6 + $0x20] sm:$0xf]
        %v283 = vld [vmem:[#allocation6 + $0x24] sm:$0xf]
        %v284 = vld [vmem:[#allocation6 + $0x28] sm:$0xf]
        %v285 = vld [vmem:[#allocation6 + $0x2c] sm:$0xf]
        %v286 = vld [vmem:[#allocation6 + $0x30] sm:$0xf]
        %v287 = vld [vmem:[#allocation6 + $0x34] sm:$0xf]
        %v288 = vld [vmem:[#allocation6 + $0x38] sm:$0xf]
        %v289 = vld [vmem:[#allocation6 + $0x3c] sm:$0xf]
        %v290 = vld [vmem:[#allocation2 + $0x8] sm:$0x1]
        %s291 = scalar_lea.vmem [#allocation6], 64
        %v292 = vld [vmem:[%s291] sm:$0xf]
        %v293 = vld [vmem:[%s291 + $0x4] sm:$0xf]
        %v294 = vld [vmem:[%s291 + $0x8] sm:$0xf]
        %v295 = vld [vmem:[%s291 + $0xc] sm:$0xf]
        %v296 = vld [vmem:[%s291 + $0x10] sm:$0xf]
        %v297 = vld [vmem:[%s291 + $0x14] sm:$0xf]
        %v298 = vld [vmem:[%s291 + $0x18] sm:$0xf]
        %v299 = vld [vmem:[%s291 + $0x1c] sm:$0xf]
        %v300 = vld [vmem:[%s291 + $0x20] sm:$0xf]
        %v301 = vld [vmem:[%s291 + $0x24] sm:$0xf]
        %v302 = vld [vmem:[%s291 + $0x28] sm:$0xf]
        %v303 = vld [vmem:[%s291 + $0x2c] sm:$0xf]
        %v304 = vld [vmem:[%s291 + $0x30] sm:$0xf]
        %v305 = vld [vmem:[%s291 + $0x34] sm:$0xf]
        %v306 = vld [vmem:[%s291 + $0x38] sm:$0xf]
        %v307 = vld [vmem:[%s291 + $0x3c] sm:$0xf]
        %v311 = vunpack.c.l.b16 %v272
        %v312 = vunpack.c.l.b16 %v273
        %v313 = vunpack.c.l.b16 %v290
        %v314 = vpack.c.b16 %v312, %v311
        %v315 = vpack.c.b16 %v313, %v313
        %vm316 = vsmask.f32 7424
        %v318 = vshrl.u32 %v314, 16
        %v320 = vshll.u32 %v314, 16
        %v322 = vrot.slane %v320, 1
        %v323 = vor.u32 %v318, %v322
        %v325 = vshll.u32 %v315, 16
        %v327 = vrot.slane %v325, 1
        %v328 = vsel %vm316, %v323, %v327
        %v346 = vunpack.c.l.b16 %v292
        %v347 = vunpack.c.l.b16 %v293
        %v348 = vunpack.c.l.b16 %v294
        %v349 = vunpack.c.l.b16 %v295
        %v350 = vunpack.c.l.b16 %v296
        %v351 = vunpack.c.l.b16 %v297
        %v352 = vunpack.c.l.b16 %v298
        %v353 = vunpack.c.l.b16 %v299
        %v354 = vunpack.c.l.b16 %v300
        %v355 = vunpack.c.l.b16 %v301
        %v356 = vunpack.c.l.b16 %v302
        %v357 = vunpack.c.l.b16 %v303
        %v358 = vunpack.c.l.b16 %v304
        %v359 = vunpack.c.l.b16 %v305
        %v360 = vunpack.c.l.b16 %v306
        %v361 = vunpack.c.l.b16 %v307
        %v362 = vpack.c.b16 %v347, %v346
        %v363 = vpack.c.b16 %v349, %v348
        %v364 = vpack.c.b16 %v351, %v350
        %v365 = vpack.c.b16 %v353, %v352
        %v366 = vpack.c.b16 %v355, %v354
        %v367 = vpack.c.b16 %v357, %v356
        %v368 = vpack.c.b16 %v359, %v358
        %v369 = vpack.c.b16 %v361, %v360
        %378 = vmatprep.subr.bf16.mxu0 0
        %379 = vmatpush1.bf16.msra.mxu0 %v362
        %380 = vmatprep.subr.bf16.mxu0 0
        %381 = vmatpush1.bf16.msra.mxu0 %v363
        %382 = vmatprep.subr.bf16.mxu0 0
        %383 = vmatpush1.bf16.msra.mxu0 %v364
        %384 = vmatprep.subr.bf16.mxu0 0
        %385 = vmatpush1.bf16.msra.mxu0 %v365
        %386 = vmatprep.subr.bf16.mxu0 0
        %387 = vmatpush1.bf16.msra.mxu0 %v366
        %388 = vmatprep.subr.bf16.mxu0 0
        %389 = vmatpush1.bf16.msra.mxu0 %v367
        %390 = vmatprep.subr.bf16.mxu0 0
        %391 = vmatpush1.bf16.msra.mxu0 %v368
        %392 = vmatprep.subr.bf16.mxu0 0
        %393 = vmatpush1.bf16.msra.mxu0 %v369
        %394 = vmatprep.subr.bf16.mxu0 0
        %395 = vmatpush1.bf16.msra.mxu0 0
        %396 = vmatprep.subr.bf16.mxu0 0
        %397 = vmatpush1.bf16.msra.mxu0 0
        %398 = vmatprep.subr.bf16.mxu0 0
        %399 = vmatpush1.bf16.msra.mxu0 0
        %400 = vmatprep.subr.bf16.mxu0 0
        %401 = vmatpush1.bf16.msra.mxu0 0
        %402 = vmatprep.subr.bf16.mxu0 0
        %403 = vmatpush1.bf16.msra.mxu0 0
        %404 = vmatprep.subr.bf16.mxu0 0
        %405 = vmatpush1.bf16.msra.mxu0 0
        %406 = vmatprep.subr.bf16.mxu0 0
        %407 = vmatpush1.bf16.msra.mxu0 0
        %408 = vmatprep.subr.bf16.mxu0 0
        %409 = vmatpush1.bf16.msra.mxu0 0
        %410 = vmatprep.mubr.bf16.mxu0 0
        %411 = vmatmul.mubr.bf16.gmra.mrb[0].mxu0 %v328
        %v412 = vpop.f32.mrb[0].mxu0
        %v413 = vadd.f32 0.0, %v412
        %v414 = vpop.f32.mrb[0].mxu0
        %v415 = vpop.f32.mrb[0].mxu0
        %v416 = vadd.f32 0.0, %v415
        %v417 = vpop.f32.mrb[0].mxu0
        %418 = vdwg.mxu0
        %v436 = vunpack.c.l.b16 %v274
        %v437 = vunpack.c.l.b16 %v275
        %v438 = vunpack.c.l.b16 %v276
        %v439 = vunpack.c.l.b16 %v277
        %v440 = vunpack.c.l.b16 %v278
        %v441 = vunpack.c.l.b16 %v279
        %v442 = vunpack.c.l.b16 %v280
        %v443 = vunpack.c.l.b16 %v281
        %v444 = vunpack.c.l.b16 %v282
        %v445 = vunpack.c.l.b16 %v283
        %v446 = vunpack.c.l.b16 %v284
        %v447 = vunpack.c.l.b16 %v285
        %v448 = vunpack.c.l.b16 %v286
        %v449 = vunpack.c.l.b16 %v287
        %v450 = vunpack.c.l.b16 %v288
        %v451 = vunpack.c.l.b16 %v289
        %v452 = vpack.c.b16 %v437, %v436
        %v453 = vpack.c.b16 %v439, %v438
        %v454 = vpack.c.b16 %v441, %v440
        %v455 = vpack.c.b16 %v443, %v442
        %v456 = vpack.c.b16 %v445, %v444
        %v457 = vpack.c.b16 %v447, %v446
        %v458 = vpack.c.b16 %v449, %v448
        %v459 = vpack.c.b16 %v451, %v450
        %468 = vmatprep.subr.bf16.mxu0 0
        %469 = vmatpush1.bf16.msra.mxu0 %v452
        %470 = vmatprep.subr.bf16.mxu0 0
        %471 = vmatpush1.bf16.msra.mxu0 %v453
        %472 = vmatprep.subr.bf16.mxu0 0
        %473 = vmatpush1.bf16.msra.mxu0 %v454
        %474 = vmatprep.subr.bf16.mxu0 0
        %475 = vmatpush1.bf16.msra.mxu0 %v455
        %476 = vmatprep.subr.bf16.mxu0 0
        %477 = vmatpush1.bf16.msra.mxu0 %v456
        %478 = vmatprep.subr.bf16.mxu0 0
        %479 = vmatpush1.bf16.msra.mxu0 %v457
        %480 = vmatprep.subr.bf16.mxu0 0
        %481 = vmatpush1.bf16.msra.mxu0 %v458
        %482 = vmatprep.subr.bf16.mxu0 0
        %483 = vmatpush1.bf16.msra.mxu0 %v459
        %484 = vmatprep.subr.bf16.mxu0 0
        %485 = vmatpush1.bf16.msra.mxu0 0
        %486 = vmatprep.subr.bf16.mxu0 0
        %487 = vmatpush1.bf16.msra.mxu0 0
        %488 = vmatprep.subr.bf16.mxu0 0
        %489 = vmatpush1.bf16.msra.mxu0 0
        %490 = vmatprep.subr.bf16.mxu0 0
        %491 = vmatpush1.bf16.msra.mxu0 0
        %492 = vmatprep.subr.bf16.mxu0 0
        %493 = vmatpush1.bf16.msra.mxu0 0
        %494 = vmatprep.subr.bf16.mxu0 0
        %495 = vmatpush1.bf16.msra.mxu0 0
        %496 = vmatprep.subr.bf16.mxu0 0
        %497 = vmatpush1.bf16.msra.mxu0 0
        %498 = vmatprep.subr.bf16.mxu0 0
        %499 = vmatpush1.bf16.msra.mxu0 0
        %500 = vmatprep.mubr.bf16.mxu0 0
        %501 = vmatmul.mubr.bf16.gmra.mrb[0].mxu0 %v314
        %v502 = vpop.f32.mrb[0].mxu0
        %v503 = vadd.f32 %v413, %v502
        %v504 = vpop.f32.mrb[0].mxu0
        %v505 = vpop.f32.mrb[0].mxu0
        %v506 = vadd.f32 %v416, %v505
        %v507 = vpop.f32.mrb[0].mxu0
        %508 = vdwg.mxu0
        %v509 = vld [vmem:[#allocation2] sm:$0xe]
        %s510 = scalar_lea.vmem [#allocation6], 128
        %v511 = vld [vmem:[%s510] sm:$0xf]
        %v512 = vld [vmem:[%s510 + $0x4] sm:$0xf]
        %v513 = vld [vmem:[%s510 + $0x8] sm:$0xf]
        %v514 = vld [vmem:[%s510 + $0xc] sm:$0xf]
        %v515 = vld [vmem:[%s510 + $0x10] sm:$0xf]
        %v516 = vld [vmem:[%s510 + $0x14] sm:$0xf]
        %v517 = vld [vmem:[%s510 + $0x18] sm:$0xf]
        %v518 = vld [vmem:[%s510 + $0x1c] sm:$0xf]
        %v519 = vld [vmem:[%s510 + $0x20] sm:$0xf]
        %v520 = vld [vmem:[%s510 + $0x24] sm:$0xf]
        %v521 = vld [vmem:[%s510 + $0x28] sm:$0xf]
        %v522 = vld [vmem:[%s510 + $0x2c] sm:$0xf]
        %v523 = vld [vmem:[%s510 + $0x30] sm:$0xf]
        %v524 = vld [vmem:[%s510 + $0x34] sm:$0xf]
        %v525 = vld [vmem:[%s510 + $0x38] sm:$0xf]
        %v526 = vld [vmem:[%s510 + $0x3c] sm:$0xf]
        %v528 = vunpack.c.l.b16 %v509
        %v529 = vpack.c.b16 %v312, %v528
        %vm530 = vcmask 1046528
        %v531 = vrot.slane %v529, 1
        %v532 = vrot.slane %v315, 1
        %v533 = vsel %vm530, %v531, %v532
        %v551 = vunpack.c.l.b16 %v511
        %v552 = vunpack.c.l.b16 %v512
        %v553 = vunpack.c.l.b16 %v513
        %v554 = vunpack.c.l.b16 %v514
        %v555 = vunpack.c.l.b16 %v515
        %v556 = vunpack.c.l.b16 %v516
        %v557 = vunpack.c.l.b16 %v517
        %v558 = vunpack.c.l.b16 %v518
        %v559 = vunpack.c.l.b16 %v519
        %v560 = vunpack.c.l.b16 %v520
        %v561 = vunpack.c.l.b16 %v521
        %v562 = vunpack.c.l.b16 %v522
        %v563 = vunpack.c.l.b16 %v523
        %v564 = vunpack.c.l.b16 %v524
        %v565 = vunpack.c.l.b16 %v525
        %v566 = vunpack.c.l.b16 %v526
        %v567 = vpack.c.b16 %v552, %v551
        %v568 = vpack.c.b16 %v554, %v553
        %v569 = vpack.c.b16 %v556, %v555
        %v570 = vpack.c.b16 %v558, %v557
        %v571 = vpack.c.b16 %v560, %v559
        %v572 = vpack.c.b16 %v562, %v561
        %v573 = vpack.c.b16 %v564, %v563
        %v574 = vpack.c.b16 %v566, %v565
        %583 = vmatprep.subr.bf16.mxu0 0
        %584 = vmatpush1.bf16.msra.mxu0 %v567
        %585 = vmatprep.subr.bf16.mxu0 0
        %586 = vmatpush1.bf16.msra.mxu0 %v568
        %587 = vmatprep.subr.bf16.mxu0 0
        %588 = vmatpush1.bf16.msra.mxu0 %v569
        %589 = vmatprep.subr.bf16.mxu0 0
        %590 = vmatpush1.bf16.msra.mxu0 %v570
        %591 = vmatprep.subr.bf16.mxu0 0
        %592 = vmatpush1.bf16.msra.mxu0 %v571
        %593 = vmatprep.subr.bf16.mxu0 0
        %594 = vmatpush1.bf16.msra.mxu0 %v572
        %595 = vmatprep.subr.bf16.mxu0 0
        %596 = vmatpush1.bf16.msra.mxu0 %v573
        %597 = vmatprep.subr.bf16.mxu0 0
        %598 = vmatpush1.bf16.msra.mxu0 %v574
        %599 = vmatprep.subr.bf16.mxu0 0
        %600 = vmatpush1.bf16.msra.mxu0 0
        %601 = vmatprep.subr.bf16.mxu0 0
        %602 = vmatpush1.bf16.msra.mxu0 0
        %603 = vmatprep.subr.bf16.mxu0 0
        %604 = vmatpush1.bf16.msra.mxu0 0
        %605 = vmatprep.subr.bf16.mxu0 0
        %606 = vmatpush1.bf16.msra.mxu0 0
        %607 = vmatprep.subr.bf16.mxu0 0
        %608 = vmatpush1.bf16.msra.mxu0 0
        %609 = vmatprep.subr.bf16.mxu0 0
        %610 = vmatpush1.bf16.msra.mxu0 0
        %611 = vmatprep.subr.bf16.mxu0 0
        %612 = vmatpush1.bf16.msra.mxu0 0
        %613 = vmatprep.subr.bf16.mxu0 0
        %614 = vmatpush1.bf16.msra.mxu0 0
        %615 = vmatprep.mubr.bf16.mxu0 0
        %616 = vmatmul.mubr.bf16.gmra.mrb[0].mxu0 %v533
        %v617 = vpop.f32.mrb[0].mxu0
        %v618 = vadd.f32 0.0, %v617
        %v619 = vpop.f32.mrb[0].mxu0
        %v620 = vpop.f32.mrb[0].mxu0
        %v621 = vadd.f32 0.0, %v620
        %v622 = vpop.f32.mrb[0].mxu0
        %623 = vdwg.mxu0
        %v624 = vadd.f32 %v503, %v618
        %v625 = vadd.f32 %v506, %v621
        %v626 = vld [vmem:[%s2] sm:$0x1]
        %v628 = vlaneseq
        %v629 = vshrl.u32 %v628, 7
        %v630 = vsub.s32 0, %v629
        %v631 = vrot.slane %v626, %v630
        %v633 = vmul.f32 %v624, %v631
        %v634 = vmul.f32 %v625, %v631
        %v635 = vld [vmem:[%s3] sm:$0x1]
        %v637 = vlaneseq
        %v638 = vshrl.u32 %v637, 7
        %v639 = vsub.s32 0, %v638
        %v640 = vrot.slane %v635, %v639
        %v642 = vadd.f32 %v633, %v640
        %v643 = vadd.f32 %v634, %v640
        %v644 = vmax.f32 %v642, 0.0
        %v645 = vmax.f32 %v643, 0.0
        %v646 = vld [vmem:[%s202] sm:$0xf]
        %v647 = vld [vmem:[%s202 + $0x4] sm:$0xf]
        %v648 = vunpack.c.l.bf16 %v646
        %v649 = vunpack.c.l.bf16 %v647
        %v650 = vadd.f32 %v648, %v644
        %v651 = vadd.f32 %v649, %v645
        %652 = vst [vmem:[%s230] sm:$0xff] %v650
        %653 = vst [vmem:[%s230 + $0x8] sm:$0xff] %v651
        %s654 = sand.u32 %s119, 1
        %s655 = scalar_lea.sflag [#allocation5], %s654
        %s656 = sand.u32 %s119, 1
        %s657 = smul.addr %s656, 16
        %s658 = scalar_lea.vmem [#allocation8], %s657
        // Predicated region
        $region45: #{tpu_custom_call.1} parent=35 // pred_check
          %p659 = pneg %p129
        $region46: #{tpu_custom_call.1} parent=35 // pred_check_branch
          %661 = sbr.rel (%p659) target = $region48
        $region47: #{tpu_custom_call.1} parent=35 // pred_region
          %s663 = ssub.s32 256, 256
          %664 = vsyncadd %s655, %s663
          %s665 = smul.addr %s22, 2
          %s666 = smul.addr %s665, 128
          %s667 = scalar_lea.hbm %s4, %s666
          %s668 = sshll.u32 %s658, 4
          %s669 = int_to_ptr.vmem [resolvable:$true] %s668
          %674 = dma.vmem_to_hbm [thread:$0]  %s669, 256, %s667, %s655, 128, 128, 8
        $region48: #{tpu_custom_call.1} parent=35 // pred_fallthru
          _
      $region36: #{tpu_custom_call.1} parent=5 // pred_fallthru
        _
      %p675 = scmp.le.s32.totalorder 2, %s17
      // Predicated region
      $region49: #{tpu_custom_call.1} parent=5 // pred_check
        %p676 = pneg %p675
      $region50: #{tpu_custom_call.1} parent=5 // pred_check_branch
        %678 = sbr.rel (%p676) target = $region52
      $region51: #{tpu_custom_call.1} parent=5 // pred_region
        %s679 = ssub.s32 %s17, 2
        // Predicated region
        $region53: #{tpu_custom_call.1} parent=51 // pred_check
          %p680 = pneg %p135
        $region54: #{tpu_custom_call.1} parent=51 // pred_check_branch
          %682 = sbr.rel (%p680) target = $region56
        $region55: #{tpu_custom_call.1} parent=51 // pred_region
          %s683 = sand.u32 %s120, 1
          %s684 = scalar_lea.sflag [#allocation5], %s683
          %s685 = sand.u32 %s120, 1
          %s686 = smul.addr %s685, 16
          %s687 = scalar_lea.vmem [#allocation8], %s686
          %688 = dma.done %s684, 256
        $region56: #{tpu_custom_call.1} parent=51 // pred_fallthru
          _
      $region52: #{tpu_custom_call.1} parent=5 // pred_fallthru
        _
    $region6: #{tpu_custom_call.1} parent=1 // loop_footer
      %s21 = sadd.s32 1, %s17
    $region7: #{tpu_custom_call.1} parent=1 // loop_footer_branch
      %16 = sbr.rel target = $region3
    $region8: #{tpu_custom_call.1} parent=1 // loop_exit
      _
    %689 = vsyncpa [#allocation4], 1
    %s690 = scalar_lea.sflag [#allocation4], 1
    %691 = vsyncpa %s690, 1
    %692 = vsyncpa [#allocation7], 1
    %693 = vsyncpa [#allocation5], 1
    %s694 = scalar_lea.sflag [#allocation5], 1
    %695 = vsyncpa %s694, 1

</llo_original>
